<compile_context>
chip_gen: v5e
topology: v5e:2x2
jax: 0.10.0
libtpu: 0.0.40
codegen_flags: <defaults>
</compile_context>

<pallas_src>
import math
import functools

import jax
import jax.numpy as jnp
from jax import lax
from jax.experimental import pallas as pl
from jax.experimental.pallas import tpu as pltpu


def _round_up(x, m):
    return ((x + m - 1) // m) * m


# Single-buffer constant operands if this jax version supports pipeline_mode.
try:
    pl.BlockSpec((8, 128), lambda i: (0, 0), pipeline_mode=pl.Buffered(1))
    _HAS_BUFFERED = True
except (TypeError, AttributeError):
    _HAS_BUFFERED = False


def _const_spec(shape):
    index_map = lambda i: (0,) * len(shape)
    if _HAS_BUFFERED:
        return pl.BlockSpec(shape, index_map, pipeline_mode=pl.Buffered(1))
    return pl.BlockSpec(shape, index_map)


def _pick_num_chunks(d):
    # Split output features into 2-4 lane-dense (multiple-of-128) chunks so the
    # VPU/EUP work on chunk c overlaps the MXU push for chunk c+1.
    for nc in (4, 2):
        if d % nc == 0 and (d // nc) % 128 == 0:
            return nc
    return 1


def _transform_kernel(x_ref, w_ref, b_ref, g_ref, beta_ref, o_ref, *scratch,
                      eps, num_chunks, mxu_dtype):
    # x_ref:    (TM, D) rows of flattened hidden states (native dtype)
    # w_ref:    (D, D)  dense weight in PyTorch Linear layout (out, in)
    # b_ref, g_ref, beta_ref: (1, D) dense bias / LN gamma / LN beta
    d = w_ref.shape[0]
    inv_d = 1.0 / float(d)
    inv_sqrt2 = 1.0 / math.sqrt(2.0)

    x = x_ref[...]
    if mxu_dtype is not None:
        x = x.astype(mxu_dtype)

    gamma = g_ref[...].astype(jnp.float32)
    beta = beta_ref[...].astype(jnp.float32)

    def dense_gelu(w_blk, b_blk):
        # y = x @ w_blk.T + b  (contract x dim 1 with w dim 1), f32 accumulate.
        h = lax.dot_general(x, w_blk, (((1,), (1,)), ((), ())),
                            preferred_element_type=jnp.float32)
        h = h + b_blk
        # Exact erf-based GELU (matches the torch.erf formulation).
        return h * 0.5 * (1.0 + lax.erf(h * inv_sqrt2))

    if num_chunks == 1:
        w = w_ref[...]
        if mxu_dtype is not None:
            w = w.astype(mxu_dtype)
        h = dense_gelu(w, b_ref[...].astype(jnp.float32))
        # Single-pass LN statistics: var = E[h^2] - u^2.
        s1 = jnp.sum(h, axis=-1, keepdims=True)
        s2 = jnp.sum(h * h, axis=-1, keepdims=True)
        u = s1 * inv_d
        var = jnp.maximum(s2 * inv_d - u * u, 0.0)
        hn = (h - u) * lax.rsqrt(var + eps)
        o_ref[...] = (gamma * hn + beta).astype(o_ref.dtype)
    else:
        (acc_ref,) = scratch
        cs = d // num_chunks
        tm = x_ref.shape[0]
        s1 = jnp.zeros((tm, 1), jnp.float32)
        s2 = jnp.zeros((tm, 1), jnp.float32)
        # Statically unrolled chunk loop: MXU pushes chunk c+1 while the VPU/EUP
        # run bias + GELU + LN partial sums on chunk c.
        for c in range(num_chunks):
            w_c = w_ref[pl.ds(c * cs, cs), :]
            if mxu_dtype is not None:
                w_c = w_c.astype(mxu_dtype)
            b_c = b_ref[:, pl.ds(c * cs, cs)].astype(jnp.float32)
            h_c = dense_gelu(w_c, b_c)
            s1 = s1 + jnp.sum(h_c, axis=-1, keepdims=True)
            s2 = s2 + jnp.sum(h_c * h_c, axis=-1, keepdims=True)
            acc_ref[:, pl.ds(c * cs, cs)] = h_c
        u = s1 * inv_d
        var = jnp.maximum(s2 * inv_d - u * u, 0.0)
        inv = lax.rsqrt(var + eps)
        h = acc_ref[...]
        o_ref[...] = (gamma * ((h - u) * inv) + beta).astype(o_ref.dtype)


def bert_prediction_head_transform(hidden_states, dense_w, dense_b, ln_w, ln_b,
                                   *, eps=1e-12, row_tile=512, mxu_dtype=None):
    """hidden_states: (N, L, D); dense_w: (D, D) PyTorch layout (out, in);
       dense_b, ln_w, ln_b: (D,). Returns (N, L, D).

       mxu_dtype: optionally (e.g. jnp.bfloat16) cast matmul operands before
       the MXU (f32 accumulate kept) -- ~3x MXU throughput on v5e for f32 inputs."""
    N, L, D = hidden_states.shape
    M = N * L

    x_dtype = hidden_states.dtype
    itemsize = jnp.dtype(x_dtype).itemsize
    # Native sublane tile for this dtype (f32: 8, bf16: 16, int8/fp8: 32).
    sublane = max(8, 32 // itemsize)

    # Clamp the row tile to the problem size, keep it sublane-aligned.
    row_tile = max(sublane, min(int(row_tile), _round_up(M, sublane)))
    row_tile = _round_up(row_tile, sublane)
    # Keep >= 2 row blocks so the "parallel" axis can feed both v7x TensorCores.
    if pl.cdiv(M, row_tile) < 2 and M > sublane:
        row_tile = max(sublane, _round_up(pl.cdiv(M, 2), sublane))

    num_row_blocks = pl.cdiv(M, row_tile)
    M_pad = num_row_blocks * row_tile

    x2d = hidden_states.reshape(M, D)
    if M_pad != M:
        # Zero rows stay finite through LN (eps inside sqrt) and are sliced off.
        x2d = jnp.pad(x2d, ((0, M_pad - M), (0, 0)))

    b2d = dense_b.reshape(1, D)
    g2d = ln_w.reshape(1, D)
    beta2d = ln_b.reshape(1, D)

    num_chunks = _pick_num_chunks(D)

    w_bytes = jnp.dtype(dense_w.dtype).itemsize
    tile_bytes = row_tile * D * itemsize
    est = (2 * 2 * tile_bytes                               # x + out, double-buffered
           + (1 if _HAS_BUFFERED else 2) * D * D * w_bytes  # resident weight
           + 2 * row_tile * D * 4                           # f32 scratch / intermediates
           + 8 * D * 4)                                     # small vectors
    try:
        vmem_cap = int(pltpu.get_tpu_info().vmem_capacity_bytes)
    except Exception:
        vmem_cap = 64 * 1024 * 1024                         # v7x per-TC (worst case)
    vmem_ceiling = (vmem_cap * 7) // 8                      # leave Mosaic headroom
    vmem_limit = int(min(max(2 * est, 32 * 1024 * 1024), vmem_ceiling))

    cost = pl.CostEstimate(
        flops=2 * M_pad * D * D,
        transcendentals=M_pad * (D + 1),                    # erf per elem + rsqrt per row
        bytes_accessed=(2 * M_pad * D * itemsize + D * D * w_bytes
                        + 3 * D * jnp.dtype(dense_b.dtype).itemsize),
    )

    scratch_shapes = []
    if num_chunks > 1:
        scratch_shapes.append(pltpu.VMEM((row_tile, D), jnp.float32))

    out = pl.pallas_call(
        functools.partial(_transform_kernel, eps=float(eps),
                          num_chunks=num_chunks, mxu_dtype=mxu_dtype),
        out_shape=jax.ShapeDtypeStruct((M_pad, D), x_dtype),
        grid_spec=pltpu.PrefetchScalarGridSpec(
            num_scalar_prefetch=0,
            grid=(num_row_blocks,),
            in_specs=[
                pl.BlockSpec((row_tile, D), lambda i: (i, 0)),  # x rows
                _const_spec((D, D)),                            # weight (out, in)
                _const_spec((1, D)),                            # dense bias
                _const_spec((1, D)),                            # LN gamma
                _const_spec((1, D)),                            # LN beta
            ],
            out_specs=pl.BlockSpec((row_tile, D), lambda i: (i, 0)),
            scratch_shapes=scratch_shapes,
        ),
        compiler_params=pltpu.CompilerParams(
            dimension_semantics=("parallel",),
            vmem_limit_bytes=vmem_limit,
        ),
        cost_estimate=cost,
    )(x2d, dense_w, b2d, g2d, beta2d)

    if M_pad != M:
        out = out[:M]
    return out.reshape(N, L, D)


def _reference(hidden_states, dense_w, dense_b, ln_w, ln_b, eps):
    h = jnp.asarray(hidden_states, jnp.float32) @ jnp.asarray(dense_w, jnp.float32).T \
        + jnp.asarray(dense_b, jnp.float32)
    h = h * 0.5 * (1.0 + lax.erf(h / math.sqrt(2.0)))
    u = jnp.mean(h, axis=-1, keepdims=True)
    s = jnp.mean((h - u) ** 2, axis=-1, keepdims=True)
    h = (h - u) / jnp.sqrt(s + eps)
    return jnp.asarray(ln_w, jnp.float32) * h + jnp.asarray(ln_b, jnp.float32)


if __name__ == "__main__":
    eps = 1e-12
    key = jax.random.PRNGKey(0)

    # --- Test 1: small (N, L, D), f32, D < 128 (unchunked path) ---
    N, L, D = 2, 8, 32
    k_x, k_w, k_b = jax.random.split(key, 3)
    hs1 = jax.random.normal(k_x, (N, L, D), dtype=jnp.float32)
    w1 = jax.random.normal(k_w, (D, D), dtype=jnp.float32) * (1.0 / math.sqrt(D))
    b1 = jax.random.normal(k_b, (D,), dtype=jnp.float32) * 0.01
    g1 = jnp.ones((D,), dtype=jnp.float32)
    be1 = jnp.zeros((D,), dtype=jnp.float32)

    out1 = jax.block_until_ready(
        bert_prediction_head_transform(hs1, w1, b1, g1, be1, eps=eps))
    ref1 = _reference(hs1, w1, b1, g1, be1, eps)
    assert out1.shape == (N, L, D)
    assert jnp.allclose(out1, ref1, atol=2e-5, rtol=2e-5), "f32 mismatch vs reference"

    # --- Test 2: M not divisible by row tile (padding path), f32, D=128 ---
    N2, L2, D2 = 2, 21, 128
    k_x2, k_w2, k_b2 = jax.random.split(jax.random.PRNGKey(1), 3)
    hs2 = jax.random.normal(k_x2, (N2, L2, D2), dtype=jnp.float32)
    w2 = jax.random.normal(k_w2, (D2, D2), dtype=jnp.float32) * (1.0 / math.sqrt(D2))
    b2 = jax.random.normal(k_b2, (D2,), dtype=jnp.float32) * 0.01
    g2 = jnp.ones((D2,), dtype=jnp.float32)
    be2 = jnp.zeros((D2,), dtype=jnp.float32)

    out2 = jax.block_until_ready(
        bert_prediction_head_transform(hs2, w2, b2, g2, be2, eps=eps, row_tile=16))
    ref2 = _reference(hs2, w2, b2, g2, be2, eps)
    assert out2.shape == (N2, L2, D2)
    assert jnp.allclose(out2, ref2, atol=2e-5, rtol=2e-5), "padded f32 mismatch vs reference"

    # --- Test 3: D=256 exercises the chunked (MXU/VPU-overlap) path, f32 ---
    N3, L3, D3 = 2, 24, 256
    k_x3, k_w3, k_b3 = jax.random.split(jax.random.PRNGKey(2), 3)
    hs3 = jax.random.normal(k_x3, (N3, L3, D3), dtype=jnp.float32)
    w3 = jax.random.normal(k_w3, (D3, D3), dtype=jnp.float32) * (1.0 / math.sqrt(D3))
    b3 = jax.random.normal(k_b3, (D3,), dtype=jnp.float32) * 0.01
    g3 = jnp.ones((D3,), dtype=jnp.float32)
    be3 = jnp.zeros((D3,), dtype=jnp.float32)

    out3 = jax.block_until_ready(
        bert_prediction_head_transform(hs3, w3, b3, g3, be3, eps=eps))
    ref3 = _reference(hs3, w3, b3, g3, be3, eps)
    assert out3.shape == (N3, L3, D3)
    assert jnp.allclose(out3, ref3, atol=2e-5, rtol=2e-5), "chunked f32 mismatch vs reference"

    # --- Test 4: bf16 operands (native bf16 MXU feed + chunked + padded) ---
    out4 = jax.block_until_ready(
        bert_prediction_head_transform(hs3.astype(jnp.bfloat16), w3.astype(jnp.bfloat16),
                                       b3.astype(jnp.bfloat16), g3.astype(jnp.bfloat16),
                                       be3.astype(jnp.bfloat16), eps=eps))
    assert out4.shape == (N3, L3, D3) and out4.dtype == jnp.bfloat16
    diff4 = float(jnp.max(jnp.abs(out4.astype(jnp.float32) - ref3)))
    assert math.isfinite(diff4) and diff4 < 0.25, "bf16 output deviates too much"

    # --- Test 5: f32 inputs with bf16 MXU feeding (v5e-style opt-in) ---
    out5 = jax.block_until_ready(
        bert_prediction_head_transform(hs2, w2, b2, g2, be2, eps=eps,
                                       mxu_dtype=jnp.bfloat16))
    diff5 = float(jnp.max(jnp.abs(out5 - ref2)))
    assert math.isfinite(diff5) and diff5 < 0.25, "bf16-MXU output deviates too much"

    print("KERNEL_OK")
</pallas_src>

<mosaic_0001>
module attributes {stable_mosaic.version = 11 : i64} {
  func.func @_transform_kernel(%arg0: i32, %arg1: memref<8x32xf32, #tpu.memory_space<vmem>>, %arg2: memref<32x32xf32, #tpu.memory_space<vmem>>, %arg3: memref<1x32xf32, #tpu.memory_space<vmem>>, %arg4: memref<1x32xf32, #tpu.memory_space<vmem>>, %arg5: memref<1x32xf32, #tpu.memory_space<vmem>>, %arg6: memref<8x32xf32, #tpu.memory_space<vmem>>) attributes {dimension_semantics = [#tpu.dimension_semantics<parallel>], iteration_bounds = array<i64: 2>, scalar_prefetch = 0 : i64, scratch_operands = 0 : i64, tpu.core_type = #tpu.core_type<tc>, window_params = [{transform_indices = @transform_0, window_bounds = array<i64: 8, 32>}, {pipeline_mode = #tpu.pipeline_mode<synchronous>, transform_indices = @transform_1, window_bounds = array<i64: 32, 32>}, {pipeline_mode = #tpu.pipeline_mode<synchronous>, transform_indices = @transform_2, window_bounds = array<i64: 1, 32>}, {pipeline_mode = #tpu.pipeline_mode<synchronous>, transform_indices = @transform_3, window_bounds = array<i64: 1, 32>}, {pipeline_mode = #tpu.pipeline_mode<synchronous>, transform_indices = @transform_4, window_bounds = array<i64: 1, 32>}, {transform_indices = @transform_5, window_bounds = array<i64: 8, 32>}]} {
    %c0 = arith.constant 0 : index
    %c0_0 = arith.constant 0 : index
    %0 = vector.load %arg1[%c0, %c0_0] : memref<8x32xf32, #tpu.memory_space<vmem>>, vector<8x32xf32>
    %c0_1 = arith.constant 0 : index
    %c0_2 = arith.constant 0 : index
    %1 = vector.load %arg4[%c0_1, %c0_2] : memref<1x32xf32, #tpu.memory_space<vmem>>, vector<1x32xf32>
    %c0_3 = arith.constant 0 : index
    %c0_4 = arith.constant 0 : index
    %2 = vector.load %arg5[%c0_3, %c0_4] : memref<1x32xf32, #tpu.memory_space<vmem>>, vector<1x32xf32>
    %c0_5 = arith.constant 0 : index
    %c0_6 = arith.constant 0 : index
    %3 = vector.load %arg2[%c0_5, %c0_6] : memref<32x32xf32, #tpu.memory_space<vmem>>, vector<32x32xf32>
    %c0_7 = arith.constant 0 : index
    %c0_8 = arith.constant 0 : index
    %4 = vector.load %arg3[%c0_7, %c0_8] : memref<1x32xf32, #tpu.memory_space<vmem>>, vector<1x32xf32>
    %cst = arith.constant dense<0.000000e+00> : vector<8x32xf32>
    %5 = tpu.matmul %0, %3, %cst {dimension_numbers = #tpu.dot_dimension_numbers<[1], [1], [0], [0], [0, 0, 1, 0], [], []>} : vector<8x32xf32>, vector<32x32xf32>, vector<8x32xf32> -> vector<8x32xf32>
    %6 = vector.broadcast %4 : vector<1x32xf32> to vector<8x32xf32>
    %7 = arith.addf %5, %6 : vector<8x32xf32>
    %cst_9 = arith.constant 5.000000e-01 : f32
    %8 = vector.broadcast %cst_9 : f32 to vector<8x32xf32>
    %9 = arith.mulf %7, %8 : vector<8x32xf32>
    %cst_10 = arith.constant 0.707106769 : f32
    %10 = vector.broadcast %cst_10 : f32 to vector<8x32xf32>
    %11 = arith.mulf %7, %10 : vector<8x32xf32>
    %12 = math.erf %11 : vector<8x32xf32>
    %cst_11 = arith.constant 1.000000e+00 : f32
    %13 = vector.broadcast %cst_11 : f32 to vector<8x32xf32>
    %14 = arith.addf %13, %12 : vector<8x32xf32>
    %15 = arith.mulf %9, %14 : vector<8x32xf32>
    %cst_12 = arith.constant dense<0.000000e+00> : vector<8xf32>
    %16 = vector.multi_reduction <add>, %15, %cst_12 [1] : vector<8x32xf32> to vector<8xf32>
    %17 = vector.shape_cast %16 : vector<8xf32> to vector<8x1xf32>
    %18 = arith.mulf %15, %15 : vector<8x32xf32>
    %cst_13 = arith.constant dense<0.000000e+00> : vector<8xf32>
    %19 = vector.multi_reduction <add>, %18, %cst_13 [1] : vector<8x32xf32> to vector<8xf32>
    %20 = vector.shape_cast %19 : vector<8xf32> to vector<8x1xf32>
    %cst_14 = arith.constant 3.125000e-02 : f32
    %21 = vector.broadcast %cst_14 : f32 to vector<8x1xf32>
    %22 = arith.mulf %17, %21 : vector<8x1xf32>
    %cst_15 = arith.constant 3.125000e-02 : f32
    %23 = vector.broadcast %cst_15 : f32 to vector<8x1xf32>
    %24 = arith.mulf %20, %23 : vector<8x1xf32>
    %25 = arith.mulf %22, %22 : vector<8x1xf32>
    %26 = arith.subf %24, %25 : vector<8x1xf32>
    %cst_16 = arith.constant 0.000000e+00 : f32
    %27 = vector.broadcast %cst_16 : f32 to vector<8x1xf32>
    %28 = arith.maximumf %26, %27 : vector<8x1xf32>
    %29 = vector.broadcast %22 : vector<8x1xf32> to vector<8x32xf32>
    %30 = arith.subf %15, %29 : vector<8x32xf32>
    %cst_17 = arith.constant 9.99999996E-13 : f32
    %31 = vector.broadcast %cst_17 : f32 to vector<8x1xf32>
    %32 = arith.addf %28, %31 : vector<8x1xf32>
    %33 = math.rsqrt %32 : vector<8x1xf32>
    %34 = vector.broadcast %33 : vector<8x1xf32> to vector<8x32xf32>
    %35 = arith.mulf %30, %34 : vector<8x32xf32>
    %36 = vector.broadcast %1 : vector<1x32xf32> to vector<8x32xf32>
    %37 = arith.mulf %36, %35 : vector<8x32xf32>
    %38 = vector.broadcast %2 : vector<1x32xf32> to vector<8x32xf32>
    %39 = arith.addf %37, %38 : vector<8x32xf32>
    %c0_18 = arith.constant 0 : index
    %c0_19 = arith.constant 0 : index
    %40 = vector.load %arg6[%c0_18, %c0_19] : memref<8x32xf32, #tpu.memory_space<vmem>>, vector<8x32xf32>
    tpu.vector_store %arg6[%c0_18, %c0_19], %39 {strides = array<i32>} : memref<8x32xf32, #tpu.memory_space<vmem>>, vector<8x32xf32>,
    return
  }
  func.func @transform_0(%arg0: i32) -> (i32, i32) {
    %c0_i32 = arith.constant 0 : i32
    %c0_i32_0 = arith.constant 0 : i32
    return %arg0, %c0_i32 : i32, i32
  }
  func.func @transform_1(%arg0: i32) -> (i32, i32) {
    %c0_i32 = arith.constant 0 : i32
    %c0_i32_0 = arith.constant 0 : i32
    %c0_i32_1 = arith.constant 0 : i32
    return %c0_i32, %c0_i32_0 : i32, i32
  }
  func.func @transform_2(%arg0: i32) -> (i32, i32) {
    %c0_i32 = arith.constant 0 : i32
    %c0_i32_0 = arith.constant 0 : i32
    %c0_i32_1 = arith.constant 0 : i32
    return %c0_i32, %c0_i32_0 : i32, i32
  }
  func.func @transform_3(%arg0: i32) -> (i32, i32) {
    %c0_i32 = arith.constant 0 : i32
    %c0_i32_0 = arith.constant 0 : i32
    %c0_i32_1 = arith.constant 0 : i32
    return %c0_i32, %c0_i32_0 : i32, i32
  }
  func.func @transform_4(%arg0: i32) -> (i32, i32) {
    %c0_i32 = arith.constant 0 : i32
    %c0_i32_0 = arith.constant 0 : i32
    %c0_i32_1 = arith.constant 0 : i32
    return %c0_i32, %c0_i32_0 : i32, i32
  }
  func.func @transform_5(%arg0: i32) -> (i32, i32) {
    %c0_i32 = arith.constant 0 : i32
    %c0_i32_0 = arith.constant 0 : i32
    return %arg0, %c0_i32 : i32, i32
  }
}

</mosaic_0001>

<llo_original>
// kernel: tpu_custom_call.1
$region0: #{tpu_custom_call.1}
  #allocation0 [shape = 'u32[]', space=smem, size = 0x4, offset = 0x4, fixed_abs, tag = 'smem constant byte address 0x4 - core index']
  #allocation1 [shape = 'u32[72,128]{1,0:T(1,128)}', space=vmem, size = 0x9000, scoped, tag = 'internal scratch']
  %s0 = inlined_call_operand.hbm [shape: f32[16,32], index: 0, kind: input, shape index: {}]
  %s1 = inlined_call_operand.hbm [shape: f32[32,32], index: 1, kind: input, shape index: {}]
  %s2 = inlined_call_operand.vmem [shape: f32[1,32], index: 2, kind: input, shape index: {}]
  %s3 = inlined_call_operand.vmem [shape: f32[1,32], index: 3, kind: input, shape index: {}]
  %s4 = inlined_call_operand.vmem [shape: f32[1,32], index: 4, kind: input, shape index: {}]
  %s5 = inlined_call_operand.hbm [shape: f32[16,32], index: 5, kind: output, shape index: {}]
  %s6 = sld [smem:[#allocation0]]
  $region61: #{tpu_custom_call.1} parent=0
    _
  %s8 = ssub.s32 1, %s6
  %s9 = scalar_select 0, %s8, %s6
  $region1: #{tpu_custom_call.1} parent=0
    #allocation2 [shape = 'u8[8192]{0}', space=vmem, size = 0x2000, scoped, tag = 'input window, operand 0']
    #allocation3 [shape = 's32[2]{0}', space=sflag, size = 0x8, scoped, tag = 'scoped memory for tpu_custom_call.1']
    #allocation4 [shape = 's32[2]{0}', space=sflag, size = 0x8, scoped, tag = 'scoped memory for tpu_custom_call.1']
    #allocation5 [shape = 'u8[16384]{0}', space=vmem, size = 0x4000, scoped, tag = 'input window, operand 1, single buffered']
    #allocation6 [shape = 's32[1]{0}', space=sflag, size = 0x4, scoped, tag = 'scoped memory for tpu_custom_call.1']
    #allocation7 [shape = 'u8[8192]{0}', space=vmem, size = 0x2000, scoped, tag = 'output window, operand 0']
    %10 = vsyncpa [#allocation3], 0
    %s11 = scalar_lea.sflag [#allocation3], 1
    %12 = vsyncpa %s11, 0
    %13 = vsyncpa [#allocation6], 0
    %14 = vsyncpa [#allocation4], 0
    %s15 = scalar_lea.sflag [#allocation4], 1
    %16 = vsyncpa %s15, 0
    loop: start=0, step=1, limit=4
    $region2: #{tpu_custom_call.1} parent=1 // loop_pre_header
      _
    $region3: #{tpu_custom_call.1} parent=1 // loop_header
      %s18 = sphi 0, %s22
      %p19 = scmp.ge.s32.totalorder %s18, 4
      %s28 = sphi 0, %s30
      %s31 = sphi 0, %s28
      %s32 = sphi 0, %s31
      %s48 = sphi 0, %s32
      %s52 = sphi 0, %s52
      %s54 = sphi 0, %s52
      %s55 = sphi 0, %s54
      %s69 = sphi 0, %s55
      %s73 = sphi 0, %s73
      %s75 = sphi 0, %s73
      %s76 = sphi 0, %s75
      %s90 = sphi 0, %s76
      %s94 = sphi 0, %s94
      %s96 = sphi 0, %s94
      %s97 = sphi 0, %s96
      %s111 = sphi 0, %s97
      %s115 = sphi 0, %s115
      %s117 = sphi 0, %s115
      %s118 = sphi 0, %s117
      %s132 = sphi 0, %s118
      %s138 = sphi 0, %s140
      %s141 = sphi 0, %s138
      %s142 = sphi 0, %s141
      %s158 = sphi 0, %s142
    $region4: #{tpu_custom_call.1} parent=1 // loop_header_branch
      %21 = sbr.rel (%p19) target = $region8
    $region5: #{tpu_custom_call.1} parent=1 // loop_body
      %s23 = ssub.s32 %s18, 1
      %s24 = ssub.s32 %s18, 2
      %s25 = sadd.s32 %s18, 1
      %s26 = ssub.s32 %s18, %s25
      %p27 = scmp.eq.s32.totalorder %s26, 0
      %s29 = sadd.s32 %s28, 1
      %s30 = scalar_select %p27, %s28, %s29
      %p33 = pneg %p27
      %p34 = scmp.eq.s32.totalorder %s18, 1
      %p35 = por %p33, %p34
      %p36 = scmp.ne.s32.totalorder %s28, %s31
      %p37 = scmp.eq.s32.totalorder %s18, 0
      %p38 = por %p36, %p37
      %p39 = scmp.ne.s32.totalorder %s28, %s31
      %p40 = scmp.eq.s32.totalorder %s23, 1
      %p41 = por %p39, %p40
      %p42 = scmp.ne.s32.totalorder %s31, %s32
      %p43 = scmp.eq.s32.totalorder %s23, 0
      %p44 = por %p42, %p43
      %p45 = scmp.ne.s32.totalorder %s31, %s32
      %p46 = scmp.eq.s32.totalorder %s24, 1
      %p47 = por %p45, %p46
      %p49 = scmp.ne.s32.totalorder %s32, %s48
      %p50 = scmp.eq.s32.totalorder %s24, 0
      %p51 = por %p49, %p50
      %s53 = sadd.s32 %s52, 1
      %p56 = scmp.eq.s32.totalorder %s18, 1
      %p57 = scmp.ne.s32.totalorder %s52, %s54
      %p58 = scmp.eq.s32.totalorder %s18, 0
      %p59 = por %p57, %p58
      %p60 = scmp.ne.s32.totalorder %s52, %s54
      %p61 = scmp.eq.s32.totalorder %s23, 1
      %p62 = por %p60, %p61
      %p63 = scmp.ne.s32.totalorder %s54, %s55
      %p64 = scmp.eq.s32.totalorder %s23, 0
      %p65 = por %p63, %p64
      %p66 = scmp.ne.s32.totalorder %s54, %s55
      %p67 = scmp.eq.s32.totalorder %s24, 1
      %p68 = por %p66, %p67
      %p70 = scmp.ne.s32.totalorder %s55, %s69
      %p71 = scmp.eq.s32.totalorder %s24, 0
      %p72 = por %p70, %p71
      %s74 = sadd.s32 %s73, 1
      %p77 = scmp.eq.s32.totalorder %s18, 1
      %p78 = scmp.ne.s32.totalorder %s73, %s75
      %p79 = scmp.eq.s32.totalorder %s18, 0
      %p80 = por %p78, %p79
      %p81 = scmp.ne.s32.totalorder %s73, %s75
      %p82 = scmp.eq.s32.totalorder %s23, 1
      %p83 = por %p81, %p82
      %p84 = scmp.ne.s32.totalorder %s75, %s76
      %p85 = scmp.eq.s32.totalorder %s23, 0
      %p86 = por %p84, %p85
      %p87 = scmp.ne.s32.totalorder %s75, %s76
      %p88 = scmp.eq.s32.totalorder %s24, 1
      %p89 = por %p87, %p88
      %p91 = scmp.ne.s32.totalorder %s76, %s90
      %p92 = scmp.eq.s32.totalorder %s24, 0
      %p93 = por %p91, %p92
      %s95 = sadd.s32 %s94, 1
      %p98 = scmp.eq.s32.totalorder %s18, 1
      %p99 = scmp.ne.s32.totalorder %s94, %s96
      %p100 = scmp.eq.s32.totalorder %s18, 0
      %p101 = por %p99, %p100
      %p102 = scmp.ne.s32.totalorder %s94, %s96
      %p103 = scmp.eq.s32.totalorder %s23, 1
      %p104 = por %p102, %p103
      %p105 = scmp.ne.s32.totalorder %s96, %s97
      %p106 = scmp.eq.s32.totalorder %s23, 0
      %p107 = por %p105, %p106
      %p108 = scmp.ne.s32.totalorder %s96, %s97
      %p109 = scmp.eq.s32.totalorder %s24, 1
      %p110 = por %p108, %p109
      %p112 = scmp.ne.s32.totalorder %s97, %s111
      %p113 = scmp.eq.s32.totalorder %s24, 0
      %p114 = por %p112, %p113
      %s116 = sadd.s32 %s115, 1
      %p119 = scmp.eq.s32.totalorder %s18, 1
      %p120 = scmp.ne.s32.totalorder %s115, %s117
      %p121 = scmp.eq.s32.totalorder %s18, 0
      %p122 = por %p120, %p121
      %p123 = scmp.ne.s32.totalorder %s115, %s117
      %p124 = scmp.eq.s32.totalorder %s23, 1
      %p125 = por %p123, %p124
      %p126 = scmp.ne.s32.totalorder %s117, %s118
      %p127 = scmp.eq.s32.totalorder %s23, 0
      %p128 = por %p126, %p127
      %p129 = scmp.ne.s32.totalorder %s117, %s118
      %p130 = scmp.eq.s32.totalorder %s24, 1
      %p131 = por %p129, %p130
      %p133 = scmp.ne.s32.totalorder %s118, %s132
      %p134 = scmp.eq.s32.totalorder %s24, 0
      %p135 = por %p133, %p134
      %s136 = ssub.s32 %s18, %s25
      %p137 = scmp.eq.s32.totalorder %s136, 0
      %s139 = sadd.s32 %s138, 1
      %s140 = scalar_select %p137, %s138, %s139
      %p143 = pneg %p137
      %p144 = scmp.eq.s32.totalorder %s18, 1
      %p145 = por %p143, %p144
      %p146 = scmp.ne.s32.totalorder %s138, %s141
      %p147 = scmp.eq.s32.totalorder %s18, 0
      %p148 = por %p146, %p147
      %p149 = scmp.ne.s32.totalorder %s138, %s141
      %p150 = scmp.eq.s32.totalorder %s23, 1
      %p151 = por %p149, %p150
      %p152 = scmp.ne.s32.totalorder %s141, %s142
      %p153 = scmp.eq.s32.totalorder %s23, 0
      %p154 = por %p152, %p153
      %p155 = scmp.ne.s32.totalorder %s141, %s142
      %p156 = scmp.eq.s32.totalorder %s24, 1
      %p157 = por %p155, %p156
      %p159 = scmp.ne.s32.totalorder %s142, %s158
      %p160 = scmp.eq.s32.totalorder %s24, 0
      %p161 = por %p159, %p160
      %p162 = scmp.le.s32.totalorder 1, %s18
      %p163 = scmp.lt.s32.totalorder %s18, 3
      %p164 = pnand %p162, %p163
      %p165 = pneg %p164
      // Predicated region
      $region9: #{tpu_custom_call.1} parent=5 // pred_check
        _
      $region10: #{tpu_custom_call.1} parent=5 // pred_check_branch
        %167 = sbr.rel (%p164) target = $region12
      $region11: #{tpu_custom_call.1} parent=5 // pred_region
        %s168 = ssub.s32 %s18, 1
        // Predicated region
        $region13: #{tpu_custom_call.1} parent=11 // pred_check
          %p169 = pneg %p65
        $region14: #{tpu_custom_call.1} parent=11 // pred_check_branch
          %171 = sbr.rel (%p169) target = $region16
        $region15: #{tpu_custom_call.1} parent=11 // pred_region
          %173 = vsyncadd [#allocation6], 0
          %s174 = sshll.u32 %s1, 4
          %s175 = int_to_ptr.hbm [resolvable:$true] %s174
          %s176 = sshll.u32 [#allocation5], 4
          %s177 = int_to_ptr.vmem [resolvable:$true] %s176
          %182 = dma.hbm_to_vmem [thread:$0]  %s175, 512, %s177, [#allocation6], 128, 128, 8
        $region16: #{tpu_custom_call.1} parent=11 // pred_fallthru
          _
        // Predicated region
        $region17: #{tpu_custom_call.1} parent=11 // pred_check
          %p183 = pneg %p86
        $region18: #{tpu_custom_call.1} parent=11 // pred_check_branch
          %185 = sbr.rel (%p183) target = $region20
        $region19: #{tpu_custom_call.1} parent=11 // pred_region
          _
        $region20: #{tpu_custom_call.1} parent=11 // pred_fallthru
          _
        // Predicated region
        $region21: #{tpu_custom_call.1} parent=11 // pred_check
          %p186 = pneg %p107
        $region22: #{tpu_custom_call.1} parent=11 // pred_check_branch
          %188 = sbr.rel (%p186) target = $region24
        $region23: #{tpu_custom_call.1} parent=11 // pred_region
          _
        $region24: #{tpu_custom_call.1} parent=11 // pred_fallthru
          _
        // Predicated region
        $region25: #{tpu_custom_call.1} parent=11 // pred_check
          %p189 = pneg %p128
        $region26: #{tpu_custom_call.1} parent=11 // pred_check_branch
          %191 = sbr.rel (%p189) target = $region28
        $region27: #{tpu_custom_call.1} parent=11 // pred_region
          _
        $region28: #{tpu_custom_call.1} parent=11 // pred_fallthru
          _
      $region12: #{tpu_custom_call.1} parent=5 // pred_fallthru
        _
      %p192 = scmp.lt.s32.totalorder %s18, 2
      // Predicated region
      $region29: #{tpu_custom_call.1} parent=5 // pred_check
        %p193 = pneg %p192
      $region30: #{tpu_custom_call.1} parent=5 // pred_check_branch
        %195 = sbr.rel (%p193) target = $region32
      $region31: #{tpu_custom_call.1} parent=5 // pred_region
        // Predicated region
        $region33: #{tpu_custom_call.1} parent=31 // pred_check
          %p196 = pneg %p38
        $region34: #{tpu_custom_call.1} parent=31 // pred_check_branch
          %198 = sbr.rel (%p196) target = $region36
        $region35: #{tpu_custom_call.1} parent=31 // pred_region
          %s199 = sand.u32 %s28, 1
          %s200 = scalar_lea.sflag [#allocation3], %s199
          %s201 = sand.u32 %s28, 1
          %s202 = smul.addr %s201, 8
          %s203 = scalar_lea.vmem [#allocation2], %s202
          %205 = vsyncadd %s200, 0
          %s206 = smul.addr %s18, 8
          %s207 = scalar_lea.hbm %s0, %s206
          %s209 = sshll.u32 %s207, 4
          %s210 = int_to_ptr.hbm [resolvable:$true] %s209
          %s211 = sshll.u32 %s203, 4
          %s212 = int_to_ptr.vmem [resolvable:$true] %s211
          %214 = dma.hbm_to_vmem [thread:$0]  %s210, 128, %s212, %s200
        $region36: #{tpu_custom_call.1} parent=31 // pred_fallthru
          _
      $region32: #{tpu_custom_call.1} parent=5 // pred_fallthru
        _
      %p215 = scmp.le.s32.totalorder 1, %s18
      %p216 = scmp.lt.s32.totalorder %s18, 3
      %p217 = pnand %p215, %p216
      %p218 = pneg %p217
      // Predicated region
      $region37: #{tpu_custom_call.1} parent=5 // pred_check
        _
      $region38: #{tpu_custom_call.1} parent=5 // pred_check_branch
        %220 = sbr.rel (%p217) target = $region40
      $region39: #{tpu_custom_call.1} parent=5 // pred_region
        %s221 = ssub.s32 %s18, 1
        %s222 = sand.u32 %s31, 1
        %s223 = scalar_lea.sflag [#allocation3], %s222
        %s224 = sand.u32 %s31, 1
        %s225 = smul.addr %s224, 8
        %s226 = scalar_lea.vmem [#allocation2], %s225
        // Predicated region
        $region41: #{tpu_custom_call.1} parent=39 // pred_check
          %p227 = pneg %p44
        $region42: #{tpu_custom_call.1} parent=39 // pred_check_branch
          %229 = sbr.rel (%p227) target = $region44
        $region43: #{tpu_custom_call.1} parent=39 // pred_region
          %231 = dma.done %s223, 128
        $region44: #{tpu_custom_call.1} parent=39 // pred_fallthru
          _
        // Predicated region
        $region45: #{tpu_custom_call.1} parent=39 // pred_check
          %p232 = pneg %p65
        $region46: #{tpu_custom_call.1} parent=39 // pred_check_branch
          %234 = sbr.rel (%p232) target = $region48
        $region47: #{tpu_custom_call.1} parent=39 // pred_region
          %236 = dma.done [#allocation6], 512
        $region48: #{tpu_custom_call.1} parent=39 // pred_fallthru
          _
        %s237 = sand.u32 %s31, 1
        %s238 = scalar_lea.sflag [#allocation3], %s237
        %s239 = sand.u32 %s31, 1
        %s240 = smul.addr %s239, 8
        %s241 = scalar_lea.vmem [#allocation2], %s240
        %p242 = pneg %p44
        %p243 = pneg %p41
        %p244 = pneg %p65
        %p245 = pneg %p62
        %p246 = pneg %p86
        %p247 = pneg %p83
        %p248 = pneg %p107
        %p249 = pneg %p104
        %p250 = pneg %p128
        %p251 = pneg %p125
        %p252 = pneg %p154
        %p253 = pneg %p151
        %s254 = sand.u32 %s141, 1
        %s255 = scalar_lea.sflag [#allocation4], %s254
        %s256 = sand.u32 %s141, 1
        %s257 = smul.addr %s256, 8
        %s258 = scalar_lea.vmem [#allocation7], %s257
        %v259 = vld [vmem:[%s226] sm:$0xff]
        %v260 = vld [vmem:[%s3] sm:$0x1]
        %v261 = vld [vmem:[%s4] sm:$0x1]
        %v262 = vld [vmem:[#allocation5] sm:$0xff]
        %v263 = vld [vmem:[#allocation5 + $0x8] sm:$0xff]
        %v264 = vld [vmem:[#allocation5 + $0x10] sm:$0xff]
        %v265 = vld [vmem:[#allocation5 + $0x18] sm:$0xff]
        %v266 = vld [vmem:[%s2] sm:$0x1]
        %v268 = vperm.slane %v266, 0
        %vm270 = vcmask 261120
        %v272 = vsel %vm270, %v259, 0
        %v275 = vsel %vm270, %v262, 0
        %v278 = vsel %vm270, %v263, 0
        %v281 = vsel %vm270, %v264, 0
        %v284 = vsel %vm270, %v265, 0
        %286 = vmatpush.xpose.msra.mxu0 0.0
        %287 = vmatpush.xpose.msra.mxu0 0.0
        %288 = vmatpush.xpose.msra.mxu0 0.0
        %289 = vmatpush.xpose.msra.mxu0 0.0
        %290 = vmatpush.xpose.msra.mxu0 0.0
        %291 = vmatpush.xpose.msra.mxu0 0.0
        %292 = vmatpush.xpose.msra.mxu0 0.0
        %293 = vmatpush.xpose.msra.mxu0 0.0
        %294 = vmatpush.xpose.msra.mxu0 0.0
        %295 = vmatpush.xpose.msra.mxu0 0.0
        %296 = vmatpush.xpose.msra.mxu0 0.0
        %297 = vmatpush.xpose.msra.mxu0 0.0
        %298 = vmatpush.xpose.msra.mxu0 %v284
        %299 = vmatpush.xpose.msra.mxu0 %v281
        %300 = vmatpush.xpose.msra.mxu0 %v278
        %301 = vmatpush.xpose.msra.mxu0 %v275
        %302 = vmatmul.f32.gmra.mxu0 %v272
        %v303 = vpop.f32.mrf.mxu0
        %v304 = vadd.f32 %v268, %v303
        %305 = vdwg.mxu0
        %v306 = vmul.f32 %v304, 0.5
        %v307 = vmul.f32 %v304, 0.70710677
        %v308 = vmul.f32 %v307, %v307
        %v309 = vmin.f32 16.0, %v308
        %v310 = vmul.f32 %v309, 2.1237322e-06
        %v311 = vadd.f32 %v310, 0.00028619796
        %v312 = vmul.f32 %v309, %v311
        %v313 = vadd.f32 %v312, 0.0036580483
        %v314 = vmul.f32 %v309, %v313
        %v315 = vadd.f32 %v314, 0.05243302
        %v316 = vmul.f32 %v309, %v315
        %v317 = vadd.f32 %v316, 0.18741608
        %v318 = vmul.f32 %v309, %v317
        %v319 = vadd.f32 %v318, 1.1283791
        %v320 = vmul.f32 %v307, %v319
        %v321 = vmul.f32 %v309, 3.8918573e-05
        %v322 = vadd.f32 %v321, 0.001143296
        %v323 = vmul.f32 %v309, %v322
        %v324 = vadd.f32 %v323, 0.014752088
        %v325 = vmul.f32 %v309, %v324
        %v326 = vadd.f32 %v325, 0.112945676
        %v327 = vmul.f32 %v309, %v326
        %v328 = vadd.f32 %v327, 0.4994258
        %v329 = vmul.f32 %v309, %v328
        %v330 = vadd.f32 %v329, 1.0
        %v331 = vrcp.pop %v330
        %v332 = vmul.f32 %v330, %v331
        %v333 = vsub.f32 1.0, %v332
        %v334 = vmul.f32 %v331, %v333
        %v335 = vadd.f32 %v331, %v334
        %vm336 = vweird.f32 %v330
        %vm337 = vweird.f32 %v331
        %vm338 = vmor %vm336, %vm337
        %v339 = vsel %vm338, %v331, %v335
        %v340 = vand.u32 2147483647, %v330
        %vm341 = vcmp.eq.f32.partialorder %v340, 8.507059e+37
        %v342 = vand.u32 %v330, 2147483648
        %v343 = vor.u32 1.1754944e-38, %v342
        %v344 = vsel %vm341, %v343, %v339
        %v345 = vmul.f32 %v320, %v344
        %v346 = vmin.f32 %v345, 1.0
        %v347 = vmax.f32 %v346, -1.0
        %v348 = vadd.f32 %v347, 1.0
        %v349 = vmul.f32 %v306, %v348
        %v350 = vsel %vm270, %v349, 0.0
        %351 = vadd.xlane.f32.xlu0 %v350
        %v352 = vpop.xlane.xlu0 %351
        %v353 = vmul.f32 %v349, %v349
        %v354 = vsel %vm270, %v353, 0.0
        %355 = vadd.xlane.f32.xlu0 %v354
        %v356 = vpop.xlane.xlu0 %355
        %v357 = vmul.f32 %v352, 0.03125
        %v358 = vmul.f32 %v356, 0.03125
        %v359 = vmul.f32 %v357, %v357
        %v360 = vsub.f32 %v358, %v359
        %v361 = vmax.f32 %v360, 0.0
        %v362 = vsub.f32 %v349, %v357
        %v363 = vadd.f32 %v361, 1e-12
        %v364 = vrsqrt.pop %v363
        %v365 = vmul.f32 %v364, %v363
        %v366 = vmul.f32 %v365, %v364
        %v367 = vmul.f32 0.5, %v366
        %v368 = vsub.f32 1.5, %v367
        %v369 = vmul.f32 %v364, %v368
        %vm370 = vweird.f32 %v363
        %vm371 = vweird.f32 %v364
        %vm372 = vmor %vm370, %vm371
        %v373 = vsel %vm372, %v364, %v369
        %v374 = vmul.f32 %v362, %v373
        %v376 = vperm.slane %v260, 0
        %v378 = vmul.f32 %v376, %v374
        %v380 = vperm.slane %v261, 0
        %v382 = vadd.f32 %v378, %v380
        %383 = vst.msk [vmem:[%s258] sm:$0xff] %vm270, %v382
        %s384 = sand.u32 %s141, 1
        %s385 = scalar_lea.sflag [#allocation4], %s384
        %s386 = sand.u32 %s141, 1
        %s387 = smul.addr %s386, 8
        %s388 = scalar_lea.vmem [#allocation7], %s387
        // Predicated region
        $region49: #{tpu_custom_call.1} parent=39 // pred_check
          %p389 = pneg %p151
        $region50: #{tpu_custom_call.1} parent=39 // pred_check_branch
          %391 = sbr.rel (%p389) target = $region52
        $region51: #{tpu_custom_call.1} parent=39 // pred_region
          %393 = vsyncadd %s385, 0
          %s394 = smul.addr %s23, 8
          %s395 = scalar_lea.hbm %s5, %s394
          %s397 = sshll.u32 %s388, 4
          %s398 = int_to_ptr.vmem [resolvable:$true] %s397
          %s399 = sshll.u32 %s395, 4
          %s400 = int_to_ptr.hbm [resolvable:$true] %s399
          %402 = dma.vmem_to_hbm [thread:$0]  %s398, 128, %s400, %s385
        $region52: #{tpu_custom_call.1} parent=39 // pred_fallthru
          _
      $region40: #{tpu_custom_call.1} parent=5 // pred_fallthru
        _
      %p403 = scmp.le.s32.totalorder 2, %s18
      // Predicated region
      $region53: #{tpu_custom_call.1} parent=5 // pred_check
        %p404 = pneg %p403
      $region54: #{tpu_custom_call.1} parent=5 // pred_check_branch
        %406 = sbr.rel (%p404) target = $region56
      $region55: #{tpu_custom_call.1} parent=5 // pred_region
        %s407 = ssub.s32 %s18, 2
        // Predicated region
        $region57: #{tpu_custom_call.1} parent=55 // pred_check
          %p408 = pneg %p157
        $region58: #{tpu_custom_call.1} parent=55 // pred_check_branch
          %410 = sbr.rel (%p408) target = $region60
        $region59: #{tpu_custom_call.1} parent=55 // pred_region
          %s411 = sand.u32 %s142, 1
          %s412 = scalar_lea.sflag [#allocation4], %s411
          %s413 = sand.u32 %s142, 1
          %s414 = smul.addr %s413, 8
          %s415 = scalar_lea.vmem [#allocation7], %s414
          %417 = dma.done %s412, 128
        $region60: #{tpu_custom_call.1} parent=55 // pred_fallthru
          _
      $region56: #{tpu_custom_call.1} parent=5 // pred_fallthru
        _
    $region6: #{tpu_custom_call.1} parent=1 // loop_footer
      %s22 = sadd.s32 1, %s18
    $region7: #{tpu_custom_call.1} parent=1 // loop_footer_branch
      %17 = sbr.rel target = $region3
    $region8: #{tpu_custom_call.1} parent=1 // loop_exit
      _
    %418 = vsyncpa [#allocation3], 1
    %s419 = scalar_lea.sflag [#allocation3], 1
    %420 = vsyncpa %s419, 1
    %421 = vsyncpa [#allocation6], 1
    %422 = vsyncpa [#allocation4], 1
    %s423 = scalar_lea.sflag [#allocation4], 1
    %424 = vsyncpa %s423, 1

</llo_original>
